<compile_context>
chip_gen: v7x
topology: tpu7x:2x2x1
jax: 0.10.0
libtpu: 0.0.40
codegen_flags: <defaults>
</compile_context>

<pallas_src>
import functools

import jax
import jax.numpy as jnp
from jax.experimental import pallas as pl
from jax.experimental.pallas import tpu as pltpu


_NEG_SLOPE = 0.01   # PyTorch nn.LeakyReLU default
_BN_EPS = 1e-5      # PyTorch nn.BatchNorm1d default


def _round_up(n, m):
    return ((n + m - 1) // m) * m


def _leaky(v):
    return jnp.where(v >= 0, v, _NEG_SLOPE * v)


def _mlp_kernel(x_ref, w1_ref, b1_ref, w2_ref, b2_ref, w3_ref, b3_ref, o_ref):
    """Fused 3-layer MLP for one batch tile: bf16 MXU operands, f32 accumulation."""
    # fc1 (+ folded BN1) + LeakyReLU
    h = jnp.dot(x_ref[...], w1_ref[...], preferred_element_type=jnp.float32)
    h = _leaky(h + b1_ref[...])
    # fc2 (+ folded BN2) + LeakyReLU          (dropout == identity in eval mode)
    h = jnp.dot(h.astype(jnp.bfloat16), w2_ref[...], preferred_element_type=jnp.float32)
    h = _leaky(h + b2_ref[...])
    # output linear
    out = jnp.dot(h.astype(jnp.bfloat16), w3_ref[...], preferred_element_type=jnp.float32)
    o_ref[...] = (out + b3_ref[...]).astype(o_ref.dtype)


def _fold_bn(params, batch_size):
    """Fold eval-mode BatchNorm (running stats) into the fc1/fc2 weights & biases.

    Honors the module's `if x.shape[0] > 1` guard: for batch==1 the fold is identity.
    """
    apply_bn = batch_size > 1

    def scale_shift(prefix):
        g = params[f"{prefix}_gamma"]
        if not apply_bn:
            return jnp.ones_like(g), jnp.zeros_like(g)
        s = g * jax.lax.rsqrt(params[f"{prefix}_var"] + _BN_EPS)
        t = params[f"{prefix}_beta"] - params[f"{prefix}_mean"] * s
        return s, t

    s1, t1 = scale_shift("bn1")
    s2, t2 = scale_shift("bn2")
    w1 = params["w1"] * s1[None, :]
    b1 = params["b1"] * s1 + t1
    w2 = params["w2"] * s2[None, :]
    b2 = params["b2"] * s2 + t2
    return w1, b1, w2, b2, params["w3"], params["b3"]


def _pad2(a, rows, cols):
    r, c = a.shape
    if r == rows and c == cols:
        return a
    return jnp.pad(a, ((0, rows - r), (0, cols - c)))


def _pad1(a, n):
    if a.shape[0] == n:
        return a
    return jnp.pad(a, ((0, n - a.shape[0]),))


@functools.partial(jax.jit, static_argnames=("block_b",))
def metadata_mlp_forward(x, params, block_b=256):
    """x: [B, D_in] float32. Returns [B, output_dim] float32."""
    B, D_in = x.shape
    H = params["w1"].shape[1]
    M = params["w2"].shape[1]
    O = params["w3"].shape[1]

    # One-time (trace-time) fold of BN into the Linear weights/biases.
    w1, b1, w2, b2, w3, b3 = _fold_bn(params, B)

    # Batch tile: as large as requested, clamped to the (8-row aligned) batch.
    bb = min(_round_up(block_b, 8), _round_up(B, 8))
    pB = _round_up(B, bb)            # whole number of batch tiles -> dense stores
    # Lane-align every feature dimension (zero padding is exact: leaky(0) == 0,
    # and the corresponding weight rows/cols are zero, so padded lanes stay 0).
    Kp = _round_up(D_in, 128)
    Hp = _round_up(H, 128)
    Mp = _round_up(M, 128)
    Op = _round_up(O, 128)

    xp = x.astype(jnp.bfloat16)
    if pB != B or Kp != D_in:
        xp = jnp.pad(xp, ((0, pB - B), (0, Kp - D_in)))

    w1p = _pad2(w1, Kp, Hp).astype(jnp.bfloat16)
    w2p = _pad2(w2, Hp, Mp).astype(jnp.bfloat16)
    w3p = _pad2(w3, Mp, Op).astype(jnp.bfloat16)
    b1p = _pad1(b1, Hp).reshape(1, -1).astype(jnp.float32)
    b2p = _pad1(b2, Mp).reshape(1, -1).astype(jnp.float32)
    b3p = _pad1(b3, Op).reshape(1, -1).astype(jnp.float32)

    # Constant index_map: weights/biases are DMA'd once and reused every step
    # (total bf16 footprint here ~160 KB, negligible vs. the VMEM budget).
    const = lambda shape: pl.BlockSpec(shape, lambda i: (0, 0))

    out = pl.pallas_call(
        _mlp_kernel,
        out_shape=jax.ShapeDtypeStruct((pB, Op), jnp.float32),
        grid_spec=pltpu.PrefetchScalarGridSpec(
            num_scalar_prefetch=0,
            grid=(pl.cdiv(pB, bb),),
            in_specs=[
                pl.BlockSpec((bb, Kp), lambda i: (i, 0)),    # x batch tile
                const((Kp, Hp)), const((1, Hp)),             # fc1 (BN1 folded in)
                const((Hp, Mp)), const((1, Mp)),             # fc2 (BN2 folded in)
                const((Mp, Op)), const((1, Op)),             # output linear
            ],
            out_specs=pl.BlockSpec((bb, Op), lambda i: (i, 0)),
        ),
        compiler_params=pltpu.CompilerParams(
            dimension_semantics=("parallel",),      # batch tiles across TCs (v7x)
            vmem_limit_bytes=32 * 1024 * 1024,      # within v7x 64 MiB physical VMEM
        ),
    )(xp, w1p, b1p, w2p, b2p, w3p, b3p)

    return out[:B, :O]


def init_params(key, input_dim, hidden_dim=256, output_dim=256):
    """Deterministic synthetic parameters (PyTorch-style init, stored [in, out])."""
    ks = jax.random.split(key, 3)
    mid = 128  # fc2 output size, fixed in the module

    def lin(k, fan_in, fan_out):
        bound = 1.0 / jnp.sqrt(fan_in)
        kw, kb = jax.random.split(k)
        w = jax.random.uniform(kw, (fan_in, fan_out), jnp.float32, -bound, bound)
        b = jax.random.uniform(kb, (fan_out,), jnp.float32, -bound, bound)
        return w, b

    w1, b1 = lin(ks[0], input_dim, hidden_dim)
    w2, b2 = lin(ks[1], hidden_dim, mid)
    w3, b3 = lin(ks[2], mid, output_dim)
    return {
        "w1": w1, "b1": b1,
        "bn1_gamma": jnp.ones((hidden_dim,), jnp.float32),
        "bn1_beta": jnp.zeros((hidden_dim,), jnp.float32),
        "bn1_mean": jnp.zeros((hidden_dim,), jnp.float32),
        "bn1_var": jnp.ones((hidden_dim,), jnp.float32),
        "w2": w2, "b2": b2,
        "bn2_gamma": jnp.ones((mid,), jnp.float32),
        "bn2_beta": jnp.zeros((mid,), jnp.float32),
        "bn2_mean": jnp.zeros((mid,), jnp.float32),
        "bn2_var": jnp.ones((mid,), jnp.float32),
        "w3": w3, "b3": b3,
    }


def _reference_f32(x, params):
    """Full-precision reference with the original PyTorch eval-mode semantics."""
    h = x @ params["w1"] + params["b1"]
    if x.shape[0] > 1:
        h = (h - params["bn1_mean"]) * jax.lax.rsqrt(params["bn1_var"] + _BN_EPS) \
            * params["bn1_gamma"] + params["bn1_beta"]
    h = _leaky(h)
    h = h @ params["w2"] + params["b2"]
    if x.shape[0] > 1:
        h = (h - params["bn2_mean"]) * jax.lax.rsqrt(params["bn2_var"] + _BN_EPS) \
            * params["bn2_gamma"] + params["bn2_beta"]
    h = _leaky(h)
    return h @ params["w3"] + params["b3"]


def _reference_mixed(x, params):
    """Reference mirroring the kernel's mixed precision (bf16 MXU operands, f32 accum)."""
    w1, b1, w2, b2, w3, b3 = _fold_bn(params, x.shape[0])
    bf = jnp.bfloat16
    h = jnp.dot(x.astype(bf), w1.astype(bf), preferred_element_type=jnp.float32) + b1
    h = _leaky(h)
    h = jnp.dot(h.astype(bf), w2.astype(bf), preferred_element_type=jnp.float32) + b2
    h = _leaky(h)
    return jnp.dot(h.astype(bf), w3.astype(bf), preferred_element_type=jnp.float32) + b3


if __name__ == "__main__":
    key = jax.random.PRNGKey(0)
    k_x, k_p = jax.random.split(key)

    # Small but non-toy: D_in=96 exercises the lane-padding path, and B=256 with
    # block_b=128 gives a 2-step "parallel" grid (both TensorCores on v7x).
    B, D_IN, HIDDEN, OUT = 256, 96, 256, 256
    x = jax.random.normal(k_x, (B, D_IN), jnp.float32)
    params = init_params(k_p, D_IN, hidden_dim=HIDDEN, output_dim=OUT)

    y = jax.block_until_ready(metadata_mlp_forward(x, params, block_b=128))
    assert y.shape == (B, OUT) and y.dtype == jnp.float32

    # Tight check vs. a reference using the same mixed-precision math.
    y_mix = _reference_mixed(x, params)
    assert jnp.allclose(y, y_mix, atol=2e-3, rtol=2e-3), "mismatch vs mixed-precision ref"

    # Loose check vs. the full-f32 module semantics (bf16 MXU rounding only).
    y_f32 = _reference_f32(x, params)
    assert jnp.allclose(y, y_f32, atol=5e-2, rtol=5e-2), "mismatch vs f32 reference"

    # batch == 1 path: the PyTorch forward skips BatchNorm entirely.
    y1 = jax.block_until_ready(metadata_mlp_forward(x[:1], params, block_b=128))
    assert jnp.allclose(y1, _reference_mixed(x[:1], params), atol=2e-3, rtol=2e-3)

    # Non-128-aligned output width exercises the generic feature-padding path.
    params_odd = init_params(k_p, D_IN, hidden_dim=HIDDEN, output_dim=200)
    y_odd = jax.block_until_ready(metadata_mlp_forward(x, params_odd, block_b=128))
    assert y_odd.shape == (B, 200)
    assert jnp.allclose(y_odd, _reference_mixed(x, params_odd), atol=2e-3, rtol=2e-3)

    # TODO(synk): Dropout(0.3) masking and BatchNorm batch-statistics are
    # training-mode behaviors; this kernel implements eval/inference semantics.
    print("KERNEL_OK")
</pallas_src>

<mosaic_0001>
module attributes {stable_mosaic.version = 11 : i64} {
  func.func @_mlp_kernel(%arg0: i32, %arg1: memref<128x128xbf16, #tpu.memory_space<vmem>>, %arg2: memref<128x256xbf16, #tpu.memory_space<vmem>>, %arg3: memref<1x256xf32, #tpu.memory_space<vmem>>, %arg4: memref<256x128xbf16, #tpu.memory_space<vmem>>, %arg5: memref<1x128xf32, #tpu.memory_space<vmem>>, %arg6: memref<128x256xbf16, #tpu.memory_space<vmem>>, %arg7: memref<1x256xf32, #tpu.memory_space<vmem>>, %arg8: memref<128x256xf32, #tpu.memory_space<vmem>>) attributes {dimension_semantics = [#tpu.dimension_semantics<parallel>], iteration_bounds = array<i64: 2>, scalar_prefetch = 0 : i64, scratch_operands = 0 : i64, tpu.core_type = #tpu.core_type<tc>, window_params = [{transform_indices = @transform_0, window_bounds = array<i64: 128, 128>}, {pipeline_mode = #tpu.pipeline_mode<synchronous>, transform_indices = @transform_1, window_bounds = array<i64: 128, 256>}, {pipeline_mode = #tpu.pipeline_mode<synchronous>, transform_indices = @transform_2, window_bounds = array<i64: 1, 256>}, {pipeline_mode = #tpu.pipeline_mode<synchronous>, transform_indices = @transform_3, window_bounds = array<i64: 256, 128>}, {pipeline_mode = #tpu.pipeline_mode<synchronous>, transform_indices = @transform_4, window_bounds = array<i64: 1, 128>}, {pipeline_mode = #tpu.pipeline_mode<synchronous>, transform_indices = @transform_5, window_bounds = array<i64: 128, 256>}, {pipeline_mode = #tpu.pipeline_mode<synchronous>, transform_indices = @transform_6, window_bounds = array<i64: 1, 256>}, {transform_indices = @transform_7, window_bounds = array<i64: 128, 256>}]} {
    %c0 = arith.constant 0 : index
    %c0_0 = arith.constant 0 : index
    %0 = vector.load %arg1[%c0, %c0_0] : memref<128x128xbf16, #tpu.memory_space<vmem>>, vector<128x128xbf16>
    %c0_1 = arith.constant 0 : index
    %c0_2 = arith.constant 0 : index
    %1 = vector.load %arg2[%c0_1, %c0_2] : memref<128x256xbf16, #tpu.memory_space<vmem>>, vector<128x256xbf16>
    %cst = arith.constant dense<0.000000e+00> : vector<128x256xf32>
    %2 = tpu.matmul %0, %1, %cst {dimension_numbers = #tpu.dot_dimension_numbers<[1], [0], [0], [1], [0, 0, 1, 1], [], []>} : vector<128x128xbf16>, vector<128x256xbf16>, vector<128x256xf32> -> vector<128x256xf32>
    %c0_3 = arith.constant 0 : index
    %c0_4 = arith.constant 0 : index
    %3 = vector.load %arg3[%c0_3, %c0_4] : memref<1x256xf32, #tpu.memory_space<vmem>>, vector<1x256xf32>
    %4 = vector.broadcast %3 : vector<1x256xf32> to vector<128x256xf32>
    %5 = arith.addf %2, %4 : vector<128x256xf32>
    %cst_5 = arith.constant 0.000000e+00 : f32
    %6 = vector.broadcast %cst_5 : f32 to vector<128x256xf32>
    %7 = arith.cmpf oge, %5, %6 : vector<128x256xf32>
    %cst_6 = arith.constant 0.00999999977 : f32
    %8 = vector.broadcast %cst_6 : f32 to vector<128x256xf32>
    %9 = arith.mulf %8, %5 : vector<128x256xf32>
    %10 = arith.select %7, %5, %9 : vector<128x256xi1>, vector<128x256xf32>
    %11 = arith.truncf %10 : vector<128x256xf32> to vector<128x256xbf16>
    %c0_7 = arith.constant 0 : index
    %c0_8 = arith.constant 0 : index
    %12 = vector.load %arg4[%c0_7, %c0_8] : memref<256x128xbf16, #tpu.memory_space<vmem>>, vector<256x128xbf16>
    %cst_9 = arith.constant dense<0.000000e+00> : vector<128x128xf32>
    %13 = tpu.matmul %11, %12, %cst_9 {dimension_numbers = #tpu.dot_dimension_numbers<[1], [0], [0], [1], [0, 0, 1, 1], [], []>} : vector<128x256xbf16>, vector<256x128xbf16>, vector<128x128xf32> -> vector<128x128xf32>
    %c0_10 = arith.constant 0 : index
    %c0_11 = arith.constant 0 : index
    %14 = vector.load %arg5[%c0_10, %c0_11] : memref<1x128xf32, #tpu.memory_space<vmem>>, vector<1x128xf32>
    %15 = vector.broadcast %14 : vector<1x128xf32> to vector<128x128xf32>
    %16 = arith.addf %13, %15 : vector<128x128xf32>
    %cst_12 = arith.constant 0.000000e+00 : f32
    %17 = vector.broadcast %cst_12 : f32 to vector<128x128xf32>
    %18 = arith.cmpf oge, %16, %17 : vector<128x128xf32>
    %cst_13 = arith.constant 0.00999999977 : f32
    %19 = vector.broadcast %cst_13 : f32 to vector<128x128xf32>
    %20 = arith.mulf %19, %16 : vector<128x128xf32>
    %21 = arith.select %18, %16, %20 : vector<128x128xi1>, vector<128x128xf32>
    %22 = arith.truncf %21 : vector<128x128xf32> to vector<128x128xbf16>
    %c0_14 = arith.constant 0 : index
    %c0_15 = arith.constant 0 : index
    %23 = vector.load %arg6[%c0_14, %c0_15] : memref<128x256xbf16, #tpu.memory_space<vmem>>, vector<128x256xbf16>
    %cst_16 = arith.constant dense<0.000000e+00> : vector<128x256xf32>
    %24 = tpu.matmul %22, %23, %cst_16 {dimension_numbers = #tpu.dot_dimension_numbers<[1], [0], [0], [1], [0, 0, 1, 1], [], []>} : vector<128x128xbf16>, vector<128x256xbf16>, vector<128x256xf32> -> vector<128x256xf32>
    %c0_17 = arith.constant 0 : index
    %c0_18 = arith.constant 0 : index
    %25 = vector.load %arg7[%c0_17, %c0_18] : memref<1x256xf32, #tpu.memory_space<vmem>>, vector<1x256xf32>
    %26 = vector.broadcast %25 : vector<1x256xf32> to vector<128x256xf32>
    %27 = arith.addf %24, %26 : vector<128x256xf32>
    %c0_19 = arith.constant 0 : index
    %c0_20 = arith.constant 0 : index
    %28 = vector.load %arg8[%c0_19, %c0_20] : memref<128x256xf32, #tpu.memory_space<vmem>>, vector<128x256xf32>
    tpu.vector_store %arg8[%c0_19, %c0_20], %27 {strides = array<i32>} : memref<128x256xf32, #tpu.memory_space<vmem>>, vector<128x256xf32>,
    return
  }
  func.func @transform_0(%arg0: i32) -> (i32, i32) {
    %c0_i32 = arith.constant 0 : i32
    %c0_i32_0 = arith.constant 0 : i32
    return %arg0, %c0_i32 : i32, i32
  }
  func.func @transform_1(%arg0: i32) -> (i32, i32) {
    %c0_i32 = arith.constant 0 : i32
    %c0_i32_0 = arith.constant 0 : i32
    %c0_i32_1 = arith.constant 0 : i32
    return %c0_i32, %c0_i32_0 : i32, i32
  }
  func.func @transform_2(%arg0: i32) -> (i32, i32) {
    %c0_i32 = arith.constant 0 : i32
    %c0_i32_0 = arith.constant 0 : i32
    %c0_i32_1 = arith.constant 0 : i32
    return %c0_i32, %c0_i32_0 : i32, i32
  }
  func.func @transform_3(%arg0: i32) -> (i32, i32) {
    %c0_i32 = arith.constant 0 : i32
    %c0_i32_0 = arith.constant 0 : i32
    %c0_i32_1 = arith.constant 0 : i32
    return %c0_i32, %c0_i32_0 : i32, i32
  }
  func.func @transform_4(%arg0: i32) -> (i32, i32) {
    %c0_i32 = arith.constant 0 : i32
    %c0_i32_0 = arith.constant 0 : i32
    %c0_i32_1 = arith.constant 0 : i32
    return %c0_i32, %c0_i32_0 : i32, i32
  }
  func.func @transform_5(%arg0: i32) -> (i32, i32) {
    %c0_i32 = arith.constant 0 : i32
    %c0_i32_0 = arith.constant 0 : i32
    %c0_i32_1 = arith.constant 0 : i32
    return %c0_i32, %c0_i32_0 : i32, i32
  }
  func.func @transform_6(%arg0: i32) -> (i32, i32) {
    %c0_i32 = arith.constant 0 : i32
    %c0_i32_0 = arith.constant 0 : i32
    %c0_i32_1 = arith.constant 0 : i32
    return %c0_i32, %c0_i32_0 : i32, i32
  }
  func.func @transform_7(%arg0: i32) -> (i32, i32) {
    %c0_i32 = arith.constant 0 : i32
    %c0_i32_0 = arith.constant 0 : i32
    return %arg0, %c0_i32 : i32, i32
  }
}

</mosaic_0001>

<llo_original>
// kernel: metadata_mlp_forward.1
$region0: #{metadata_mlp_forward.1}
  #allocation0 [shape = 'u32[]', space=smem, size = 0x4, offset = 0x4, fixed_abs, tag = 'smem constant byte address 0x4 - core index']
  #allocation1 [shape = 'u32[144,128]{1,0:T(1,128)}', space=vmem, size = 0x12000, scoped, tag = 'internal scratch']
  %s0 = inlined_call_operand.vmem [shape: bf16[256,128], index: 0, kind: input, shape index: {}]
  %s1 = inlined_call_operand.vmem [shape: bf16[128,256], index: 1, kind: input, shape index: {}]
  %s2 = inlined_call_operand.vmem [shape: f32[1,256], index: 2, kind: input, shape index: {}]
  %s3 = inlined_call_operand.vmem [shape: bf16[256,128], index: 3, kind: input, shape index: {}]
  %s4 = inlined_call_operand.vmem [shape: f32[1,128], index: 4, kind: input, shape index: {}]
  %s5 = inlined_call_operand.vmem [shape: bf16[128,256], index: 5, kind: input, shape index: {}]
  %s6 = inlined_call_operand.vmem [shape: f32[1,256], index: 6, kind: input, shape index: {}]
  %s7 = inlined_call_operand.hbm [shape: f32[256,256], index: 7, kind: output, shape index: {}]
  %s8 = sld [smem:[#allocation0]]
  $region61: #{metadata_mlp_forward.1} parent=0
    _
  %s10 = ssub.s32 1, %s8
  %s11 = scalar_select 0, %s10, %s8
  $region1: #{metadata_mlp_forward.1} parent=0
    #allocation2 [shape = 'u8[262144]{0}', space=vmem, size = 0x40000, scoped, tag = 'output window, operand 0']
    #allocation3 [shape = 's32[2]{0}', space=sflag, size = 0x8, scoped, tag = 'scoped memory for metadata_mlp_forward.1']
    %12 = vsyncpa [#allocation3], 0
    %s13 = scalar_lea.sflag [#allocation3], 1
    %14 = vsyncpa %s13, 0
    loop: start=0, step=1, limit=4
    $region2: #{metadata_mlp_forward.1} parent=1 // loop_pre_header
      _
    $region3: #{metadata_mlp_forward.1} parent=1 // loop_header
      %s16 = sphi 0, %s20
      %p17 = scmp.ge.s32.totalorder %s16, 4
      %s26 = sphi 0, %s28
      %s29 = sphi 0, %s26
      %s30 = sphi 0, %s29
      %s46 = sphi 0, %s30
      %s50 = sphi 0, %s50
      %s52 = sphi 0, %s50
      %s53 = sphi 0, %s52
      %s67 = sphi 0, %s53
      %s71 = sphi 0, %s71
      %s73 = sphi 0, %s71
      %s74 = sphi 0, %s73
      %s88 = sphi 0, %s74
      %s92 = sphi 0, %s92
      %s94 = sphi 0, %s92
      %s95 = sphi 0, %s94
      %s109 = sphi 0, %s95
      %s113 = sphi 0, %s113
      %s115 = sphi 0, %s113
      %s116 = sphi 0, %s115
      %s130 = sphi 0, %s116
      %s134 = sphi 0, %s134
      %s136 = sphi 0, %s134
      %s137 = sphi 0, %s136
      %s151 = sphi 0, %s137
      %s155 = sphi 0, %s155
      %s157 = sphi 0, %s155
      %s158 = sphi 0, %s157
      %s172 = sphi 0, %s158
      %s178 = sphi 0, %s180
      %s181 = sphi 0, %s178
      %s182 = sphi 0, %s181
      %s198 = sphi 0, %s182
    $region4: #{metadata_mlp_forward.1} parent=1 // loop_header_branch
      %19 = sbr.rel (%p17) target = $region8
    $region5: #{metadata_mlp_forward.1} parent=1 // loop_body
      %s21 = ssub.s32 %s16, 1
      %s22 = ssub.s32 %s16, 2
      %s23 = sadd.s32 %s16, 1
      %s24 = ssub.s32 %s16, %s23
      %p25 = scmp.eq.s32.totalorder %s24, 0
      %s27 = sadd.s32 %s26, 1
      %s28 = scalar_select %p25, %s26, %s27
      %p31 = pneg %p25
      %p32 = scmp.eq.s32.totalorder %s16, 1
      %p33 = por %p31, %p32
      %p34 = scmp.ne.s32.totalorder %s26, %s29
      %p35 = scmp.eq.s32.totalorder %s16, 0
      %p36 = por %p34, %p35
      %p37 = scmp.ne.s32.totalorder %s26, %s29
      %p38 = scmp.eq.s32.totalorder %s21, 1
      %p39 = por %p37, %p38
      %p40 = scmp.ne.s32.totalorder %s29, %s30
      %p41 = scmp.eq.s32.totalorder %s21, 0
      %p42 = por %p40, %p41
      %p43 = scmp.ne.s32.totalorder %s29, %s30
      %p44 = scmp.eq.s32.totalorder %s22, 1
      %p45 = por %p43, %p44
      %p47 = scmp.ne.s32.totalorder %s30, %s46
      %p48 = scmp.eq.s32.totalorder %s22, 0
      %p49 = por %p47, %p48
      %s51 = sadd.s32 %s50, 1
      %p54 = scmp.eq.s32.totalorder %s16, 1
      %p55 = scmp.ne.s32.totalorder %s50, %s52
      %p56 = scmp.eq.s32.totalorder %s16, 0
      %p57 = por %p55, %p56
      %p58 = scmp.ne.s32.totalorder %s50, %s52
      %p59 = scmp.eq.s32.totalorder %s21, 1
      %p60 = por %p58, %p59
      %p61 = scmp.ne.s32.totalorder %s52, %s53
      %p62 = scmp.eq.s32.totalorder %s21, 0
      %p63 = por %p61, %p62
      %p64 = scmp.ne.s32.totalorder %s52, %s53
      %p65 = scmp.eq.s32.totalorder %s22, 1
      %p66 = por %p64, %p65
      %p68 = scmp.ne.s32.totalorder %s53, %s67
      %p69 = scmp.eq.s32.totalorder %s22, 0
      %p70 = por %p68, %p69
      %s72 = sadd.s32 %s71, 1
      %p75 = scmp.eq.s32.totalorder %s16, 1
      %p76 = scmp.ne.s32.totalorder %s71, %s73
      %p77 = scmp.eq.s32.totalorder %s16, 0
      %p78 = por %p76, %p77
      %p79 = scmp.ne.s32.totalorder %s71, %s73
      %p80 = scmp.eq.s32.totalorder %s21, 1
      %p81 = por %p79, %p80
      %p82 = scmp.ne.s32.totalorder %s73, %s74
      %p83 = scmp.eq.s32.totalorder %s21, 0
      %p84 = por %p82, %p83
      %p85 = scmp.ne.s32.totalorder %s73, %s74
      %p86 = scmp.eq.s32.totalorder %s22, 1
      %p87 = por %p85, %p86
      %p89 = scmp.ne.s32.totalorder %s74, %s88
      %p90 = scmp.eq.s32.totalorder %s22, 0
      %p91 = por %p89, %p90
      %s93 = sadd.s32 %s92, 1
      %p96 = scmp.eq.s32.totalorder %s16, 1
      %p97 = scmp.ne.s32.totalorder %s92, %s94
      %p98 = scmp.eq.s32.totalorder %s16, 0
      %p99 = por %p97, %p98
      %p100 = scmp.ne.s32.totalorder %s92, %s94
      %p101 = scmp.eq.s32.totalorder %s21, 1
      %p102 = por %p100, %p101
      %p103 = scmp.ne.s32.totalorder %s94, %s95
      %p104 = scmp.eq.s32.totalorder %s21, 0
      %p105 = por %p103, %p104
      %p106 = scmp.ne.s32.totalorder %s94, %s95
      %p107 = scmp.eq.s32.totalorder %s22, 1
      %p108 = por %p106, %p107
      %p110 = scmp.ne.s32.totalorder %s95, %s109
      %p111 = scmp.eq.s32.totalorder %s22, 0
      %p112 = por %p110, %p111
      %s114 = sadd.s32 %s113, 1
      %p117 = scmp.eq.s32.totalorder %s16, 1
      %p118 = scmp.ne.s32.totalorder %s113, %s115
      %p119 = scmp.eq.s32.totalorder %s16, 0
      %p120 = por %p118, %p119
      %p121 = scmp.ne.s32.totalorder %s113, %s115
      %p122 = scmp.eq.s32.totalorder %s21, 1
      %p123 = por %p121, %p122
      %p124 = scmp.ne.s32.totalorder %s115, %s116
      %p125 = scmp.eq.s32.totalorder %s21, 0
      %p126 = por %p124, %p125
      %p127 = scmp.ne.s32.totalorder %s115, %s116
      %p128 = scmp.eq.s32.totalorder %s22, 1
      %p129 = por %p127, %p128
      %p131 = scmp.ne.s32.totalorder %s116, %s130
      %p132 = scmp.eq.s32.totalorder %s22, 0
      %p133 = por %p131, %p132
      %s135 = sadd.s32 %s134, 1
      %p138 = scmp.eq.s32.totalorder %s16, 1
      %p139 = scmp.ne.s32.totalorder %s134, %s136
      %p140 = scmp.eq.s32.totalorder %s16, 0
      %p141 = por %p139, %p140
      %p142 = scmp.ne.s32.totalorder %s134, %s136
      %p143 = scmp.eq.s32.totalorder %s21, 1
      %p144 = por %p142, %p143
      %p145 = scmp.ne.s32.totalorder %s136, %s137
      %p146 = scmp.eq.s32.totalorder %s21, 0
      %p147 = por %p145, %p146
      %p148 = scmp.ne.s32.totalorder %s136, %s137
      %p149 = scmp.eq.s32.totalorder %s22, 1
      %p150 = por %p148, %p149
      %p152 = scmp.ne.s32.totalorder %s137, %s151
      %p153 = scmp.eq.s32.totalorder %s22, 0
      %p154 = por %p152, %p153
      %s156 = sadd.s32 %s155, 1
      %p159 = scmp.eq.s32.totalorder %s16, 1
      %p160 = scmp.ne.s32.totalorder %s155, %s157
      %p161 = scmp.eq.s32.totalorder %s16, 0
      %p162 = por %p160, %p161
      %p163 = scmp.ne.s32.totalorder %s155, %s157
      %p164 = scmp.eq.s32.totalorder %s21, 1
      %p165 = por %p163, %p164
      %p166 = scmp.ne.s32.totalorder %s157, %s158
      %p167 = scmp.eq.s32.totalorder %s21, 0
      %p168 = por %p166, %p167
      %p169 = scmp.ne.s32.totalorder %s157, %s158
      %p170 = scmp.eq.s32.totalorder %s22, 1
      %p171 = por %p169, %p170
      %p173 = scmp.ne.s32.totalorder %s158, %s172
      %p174 = scmp.eq.s32.totalorder %s22, 0
      %p175 = por %p173, %p174
      %s176 = ssub.s32 %s16, %s23
      %p177 = scmp.eq.s32.totalorder %s176, 0
      %s179 = sadd.s32 %s178, 1
      %s180 = scalar_select %p177, %s178, %s179
      %p183 = pneg %p177
      %p184 = scmp.eq.s32.totalorder %s16, 1
      %p185 = por %p183, %p184
      %p186 = scmp.ne.s32.totalorder %s178, %s181
      %p187 = scmp.eq.s32.totalorder %s16, 0
      %p188 = por %p186, %p187
      %p189 = scmp.ne.s32.totalorder %s178, %s181
      %p190 = scmp.eq.s32.totalorder %s21, 1
      %p191 = por %p189, %p190
      %p192 = scmp.ne.s32.totalorder %s181, %s182
      %p193 = scmp.eq.s32.totalorder %s21, 0
      %p194 = por %p192, %p193
      %p195 = scmp.ne.s32.totalorder %s181, %s182
      %p196 = scmp.eq.s32.totalorder %s22, 1
      %p197 = por %p195, %p196
      %p199 = scmp.ne.s32.totalorder %s182, %s198
      %p200 = scmp.eq.s32.totalorder %s22, 0
      %p201 = por %p199, %p200
      %p202 = scmp.le.s32.totalorder 1, %s16
      %p203 = scmp.lt.s32.totalorder %s16, 3
      %p204 = pnand %p202, %p203
      %p205 = pneg %p204
      // Predicated region
      $region9: #{metadata_mlp_forward.1} parent=5 // pred_check
        _
      $region10: #{metadata_mlp_forward.1} parent=5 // pred_check_branch
        %207 = sbr.rel (%p204) target = $region12
      $region11: #{metadata_mlp_forward.1} parent=5 // pred_region
        %s208 = ssub.s32 %s16, 1
        // Predicated region
        $region13: #{metadata_mlp_forward.1} parent=11 // pred_check
          %p209 = pneg %p63
        $region14: #{metadata_mlp_forward.1} parent=11 // pred_check_branch
          %211 = sbr.rel (%p209) target = $region16
        $region15: #{metadata_mlp_forward.1} parent=11 // pred_region
          _
        $region16: #{metadata_mlp_forward.1} parent=11 // pred_fallthru
          _
        // Predicated region
        $region17: #{metadata_mlp_forward.1} parent=11 // pred_check
          %p212 = pneg %p84
        $region18: #{metadata_mlp_forward.1} parent=11 // pred_check_branch
          %214 = sbr.rel (%p212) target = $region20
        $region19: #{metadata_mlp_forward.1} parent=11 // pred_region
          _
        $region20: #{metadata_mlp_forward.1} parent=11 // pred_fallthru
          _
        // Predicated region
        $region21: #{metadata_mlp_forward.1} parent=11 // pred_check
          %p215 = pneg %p105
        $region22: #{metadata_mlp_forward.1} parent=11 // pred_check_branch
          %217 = sbr.rel (%p215) target = $region24
        $region23: #{metadata_mlp_forward.1} parent=11 // pred_region
          _
        $region24: #{metadata_mlp_forward.1} parent=11 // pred_fallthru
          _
        // Predicated region
        $region25: #{metadata_mlp_forward.1} parent=11 // pred_check
          %p218 = pneg %p126
        $region26: #{metadata_mlp_forward.1} parent=11 // pred_check_branch
          %220 = sbr.rel (%p218) target = $region28
        $region27: #{metadata_mlp_forward.1} parent=11 // pred_region
          _
        $region28: #{metadata_mlp_forward.1} parent=11 // pred_fallthru
          _
        // Predicated region
        $region29: #{metadata_mlp_forward.1} parent=11 // pred_check
          %p221 = pneg %p147
        $region30: #{metadata_mlp_forward.1} parent=11 // pred_check_branch
          %223 = sbr.rel (%p221) target = $region32
        $region31: #{metadata_mlp_forward.1} parent=11 // pred_region
          _
        $region32: #{metadata_mlp_forward.1} parent=11 // pred_fallthru
          _
        // Predicated region
        $region33: #{metadata_mlp_forward.1} parent=11 // pred_check
          %p224 = pneg %p168
        $region34: #{metadata_mlp_forward.1} parent=11 // pred_check_branch
          %226 = sbr.rel (%p224) target = $region36
        $region35: #{metadata_mlp_forward.1} parent=11 // pred_region
          _
        $region36: #{metadata_mlp_forward.1} parent=11 // pred_fallthru
          _
      $region12: #{metadata_mlp_forward.1} parent=5 // pred_fallthru
        _
      %p227 = scmp.lt.s32.totalorder %s16, 2
      // Predicated region
      $region37: #{metadata_mlp_forward.1} parent=5 // pred_check
        %p228 = pneg %p227
      $region38: #{metadata_mlp_forward.1} parent=5 // pred_check_branch
        %230 = sbr.rel (%p228) target = $region40
      $region39: #{metadata_mlp_forward.1} parent=5 // pred_region
        // Predicated region
        $region41: #{metadata_mlp_forward.1} parent=39 // pred_check
          %p231 = pneg %p36
        $region42: #{metadata_mlp_forward.1} parent=39 // pred_check_branch
          %233 = sbr.rel (%p231) target = $region44
        $region43: #{metadata_mlp_forward.1} parent=39 // pred_region
          %s234 = smul.u32 16, %s16
          %p235 = scmp.lt.s32.totalorder %s234, 31
          %s236 = scalar_select %p235, %s234, 31
          %s237 = smul.addr %s236, 4
          %s238 = scalar_lea.vmem %s0, %s237
          %s239 = smul.u32 16, %s16
        $region44: #{metadata_mlp_forward.1} parent=39 // pred_fallthru
          _
      $region40: #{metadata_mlp_forward.1} parent=5 // pred_fallthru
        _
      %p240 = scmp.le.s32.totalorder 1, %s16
      %p241 = scmp.lt.s32.totalorder %s16, 3
      %p242 = pnand %p240, %p241
      %p243 = pneg %p242
      // Predicated region
      $region45: #{metadata_mlp_forward.1} parent=5 // pred_check
        _
      $region46: #{metadata_mlp_forward.1} parent=5 // pred_check_branch
        %245 = sbr.rel (%p242) target = $region48
      $region47: #{metadata_mlp_forward.1} parent=5 // pred_region
        %s246 = ssub.s32 %s16, 1
        %s247 = smul.u32 16, %s21
        %p248 = scmp.lt.s32.totalorder %s247, 31
        %s249 = scalar_select %p248, %s247, 31
        %s250 = smul.addr %s249, 4
        %s251 = scalar_lea.vmem %s0, %s250
        %p252 = pneg %p42
        %p253 = pneg %p39
        %p254 = pneg %p63
        %p255 = pneg %p60
        %p256 = pneg %p84
        %p257 = pneg %p81
        %p258 = pneg %p105
        %p259 = pneg %p102
        %p260 = pneg %p126
        %p261 = pneg %p123
        %p262 = pneg %p147
        %p263 = pneg %p144
        %p264 = pneg %p168
        %p265 = pneg %p165
        %p266 = pneg %p194
        %p267 = pneg %p191
        %s268 = sand.u32 %s181, 1
        %s269 = scalar_lea.sflag [#allocation3], %s268
        %s270 = sand.u32 %s181, 1
        %s271 = smul.addr %s270, 256
        %s272 = scalar_lea.vmem [#allocation2], %s271
        %s273 = smul.u32 16, %s21
        %p274 = scmp.lt.s32.totalorder %s273, 31
        %s275 = scalar_select %p274, %s273, 31
        %s276 = smul.addr %s275, 4
        %s277 = scalar_lea.vmem %s0, %s276
        %s278 = smul.u32 16, %s21
        %s279 = smul.u32 16, %s21
        %v281 = vld [vmem:[%s277] sm:$0xf]
        %v282 = vld [vmem:[%s277 + $0x4] sm:$0xf]
        %v283 = vld [vmem:[%s277 + $0x8] sm:$0xf]
        %v284 = vld [vmem:[%s277 + $0xc] sm:$0xf]
        %v285 = vld [vmem:[%s277 + $0x10] sm:$0xf]
        %v286 = vld [vmem:[%s277 + $0x14] sm:$0xf]
        %v287 = vld [vmem:[%s277 + $0x18] sm:$0xf]
        %v288 = vld [vmem:[%s277 + $0x1c] sm:$0xf]
        %v289 = vld [vmem:[%s277 + $0x20] sm:$0xf]
        %v290 = vld [vmem:[%s277 + $0x24] sm:$0xf]
        %v291 = vld [vmem:[%s277 + $0x28] sm:$0xf]
        %v292 = vld [vmem:[%s277 + $0x2c] sm:$0xf]
        %v293 = vld [vmem:[%s277 + $0x30] sm:$0xf]
        %v294 = vld [vmem:[%s277 + $0x34] sm:$0xf]
        %v295 = vld [vmem:[%s277 + $0x38] sm:$0xf]
        %v296 = vld [vmem:[%s277 + $0x3c] sm:$0xf]
        %v297 = vld [vmem:[%s1] sm:$0xff]
        %v298 = vld [vmem:[%s1 + $0x8] sm:$0xff]
        %v299 = vld [vmem:[%s1 + $0x10] sm:$0xff]
        %v300 = vld [vmem:[%s1 + $0x18] sm:$0xff]
        %v301 = vld [vmem:[%s1 + $0x20] sm:$0xff]
        %v302 = vld [vmem:[%s1 + $0x28] sm:$0xff]
        %v303 = vld [vmem:[%s1 + $0x30] sm:$0xff]
        %v304 = vld [vmem:[%s1 + $0x38] sm:$0xff]
        %v305 = vld [vmem:[%s1 + $0x40] sm:$0xff]
        %v306 = vld [vmem:[%s1 + $0x48] sm:$0xff]
        %v307 = vld [vmem:[%s1 + $0x50] sm:$0xff]
        %v308 = vld [vmem:[%s1 + $0x58] sm:$0xff]
        %v309 = vld [vmem:[%s1 + $0x60] sm:$0xff]
        %v310 = vld [vmem:[%s1 + $0x68] sm:$0xff]
        %v311 = vld [vmem:[%s1 + $0x70] sm:$0xff]
        %v312 = vld [vmem:[%s1 + $0x78] sm:$0xff]
        %v313 = vld [vmem:[%s2] sm:$0x3]
        %v315 = vlaneseq
        %v316 = vshrl.u32 %v315, 7
        %v317 = vsub.s32 0, %v316
        %v318 = vrot.slane %v313, %v317
        %v319 = vlaneseq
        %v320 = vshrl.u32 %v319, 7
        %v321 = vsub.s32 1, %v320
        %v322 = vrot.slane %v313, %v321
        %v341 = vunpack.c.l.b16 %v281
        %v342 = vunpack.c.l.b16 %v282
        %v343 = vunpack.c.l.b16 %v283
        %v344 = vunpack.c.l.b16 %v284
        %v345 = vunpack.c.l.b16 %v285
        %v346 = vunpack.c.l.b16 %v286
        %v347 = vunpack.c.l.b16 %v287
        %v348 = vunpack.c.l.b16 %v288
        %v349 = vunpack.c.l.b16 %v289
        %v350 = vunpack.c.l.b16 %v290
        %v351 = vunpack.c.l.b16 %v291
        %v352 = vunpack.c.l.b16 %v292
        %v353 = vunpack.c.l.b16 %v293
        %v354 = vunpack.c.l.b16 %v294
        %v355 = vunpack.c.l.b16 %v295
        %v356 = vunpack.c.l.b16 %v296
        %v357 = vpack.c.b16 %v342, %v341
        %v358 = vpack.c.b16 %v344, %v343
        %v359 = vpack.c.b16 %v346, %v345
        %v360 = vpack.c.b16 %v348, %v347
        %v361 = vpack.c.b16 %v350, %v349
        %v362 = vpack.c.b16 %v352, %v351
        %v363 = vpack.c.b16 %v354, %v353
        %v364 = vpack.c.b16 %v356, %v355
        %v389 = vunpack.c.l.b16 %v297
        %v390 = vunpack.c.h.b16 %v297
        %v391 = vunpack.c.l.b16 %v298
        %v392 = vunpack.c.h.b16 %v298
        %v393 = vunpack.c.l.b16 %v299
        %v394 = vunpack.c.h.b16 %v299
        %v395 = vunpack.c.l.b16 %v300
        %v396 = vunpack.c.h.b16 %v300
        %v397 = vunpack.c.l.b16 %v301
        %v398 = vunpack.c.h.b16 %v301
        %v399 = vunpack.c.l.b16 %v302
        %v400 = vunpack.c.h.b16 %v302
        %v401 = vunpack.c.l.b16 %v303
        %v402 = vunpack.c.h.b16 %v303
        %v403 = vunpack.c.l.b16 %v304
        %v404 = vunpack.c.h.b16 %v304
        %v405 = vunpack.c.l.b16 %v305
        %v406 = vunpack.c.h.b16 %v305
        %v407 = vunpack.c.l.b16 %v306
        %v408 = vunpack.c.h.b16 %v306
        %v409 = vunpack.c.l.b16 %v307
        %v410 = vunpack.c.h.b16 %v307
        %v411 = vunpack.c.l.b16 %v308
        %v412 = vunpack.c.h.b16 %v308
        %v413 = vunpack.c.l.b16 %v309
        %v414 = vunpack.c.h.b16 %v309
        %v415 = vunpack.c.l.b16 %v310
        %v416 = vunpack.c.h.b16 %v310
        %v417 = vunpack.c.l.b16 %v311
        %v418 = vunpack.c.h.b16 %v311
        %v419 = vunpack.c.l.b16 %v312
        %v420 = vunpack.c.h.b16 %v312
        %v421 = vpack.c.b16 %v391, %v389
        %v422 = vpack.c.b16 %v392, %v390
        %v423 = vpack.c.b16 %v395, %v393
        %v424 = vpack.c.b16 %v396, %v394
        %v425 = vpack.c.b16 %v399, %v397
        %v426 = vpack.c.b16 %v400, %v398
        %v427 = vpack.c.b16 %v403, %v401
        %v428 = vpack.c.b16 %v404, %v402
        %v429 = vpack.c.b16 %v407, %v405
        %v430 = vpack.c.b16 %v408, %v406
        %v431 = vpack.c.b16 %v411, %v409
        %v432 = vpack.c.b16 %v412, %v410
        %v433 = vpack.c.b16 %v415, %v413
        %v434 = vpack.c.b16 %v416, %v414
        %v435 = vpack.c.b16 %v419, %v417
        %v436 = vpack.c.b16 %v420, %v418
        %453 = vmatprep.subr.bf16.mxu0 %v422
        %454 = vmatpush1.bf16.msra.mxu0 %v421
        %455 = vmatprep.subr.bf16.mxu0 %v424
        %456 = vmatpush1.bf16.msra.mxu0 %v423
        %457 = vmatprep.subr.bf16.mxu0 %v426
        %458 = vmatpush1.bf16.msra.mxu0 %v425
        %459 = vmatprep.subr.bf16.mxu0 %v428
        %460 = vmatpush1.bf16.msra.mxu0 %v427
        %461 = vmatprep.subr.bf16.mxu0 %v430
        %462 = vmatpush1.bf16.msra.mxu0 %v429
        %463 = vmatprep.subr.bf16.mxu0 %v432
        %464 = vmatpush1.bf16.msra.mxu0 %v431
        %465 = vmatprep.subr.bf16.mxu0 %v434
        %466 = vmatpush1.bf16.msra.mxu0 %v433
        %467 = vmatprep.subr.bf16.mxu0 %v436
        %468 = vmatpush1.bf16.msra.mxu0 %v435
        %469 = vmatprep.subr.bf16.mxu0 0
        %470 = vmatpush1.bf16.msra.mxu0 0
        %471 = vmatprep.subr.bf16.mxu0 0
        %472 = vmatpush1.bf16.msra.mxu0 0
        %473 = vmatprep.subr.bf16.mxu0 0
        %474 = vmatpush1.bf16.msra.mxu0 0
        %475 = vmatprep.subr.bf16.mxu0 0
        %476 = vmatpush1.bf16.msra.mxu0 0
        %477 = vmatprep.subr.bf16.mxu0 0
        %478 = vmatpush1.bf16.msra.mxu0 0
        %479 = vmatprep.subr.bf16.mxu0 0
        %480 = vmatpush1.bf16.msra.mxu0 0
        %481 = vmatprep.subr.bf16.mxu0 0
        %482 = vmatpush1.bf16.msra.mxu0 0
        %483 = vmatprep.subr.bf16.mxu0 0
        %484 = vmatpush1.bf16.msra.mxu0 0
        %485 = vmatprep.mubr.bf16.mxu0 0
        %486 = vmatmul.mubr.bf16.gmra.mrb[0].mxu0 %v357
        %v487 = vpop.f32.mrb[0].mxu0
        %v488 = vadd.f32 %v318, %v487
        %v489 = vpop.f32.mrb[0].mxu0
        %v490 = vadd.f32 %v322, %v489
        %v491 = vpop.f32.mrb[0].mxu0
        %v492 = vadd.f32 %v318, %v491
        %v493 = vpop.f32.mrb[0].mxu0
        %v494 = vadd.f32 %v322, %v493
        %495 = vmatprep.mubr.bf16.mxu0 0
        %496 = vmatmul.mubr.bf16.gmra.mrb[0].mxu0 %v358
        %v497 = vpop.f32.mrb[0].mxu0
        %v498 = vadd.f32 %v318, %v497
        %v499 = vpop.f32.mrb[0].mxu0
        %v500 = vadd.f32 %v322, %v499
        %v501 = vpop.f32.mrb[0].mxu0
        %v502 = vadd.f32 %v318, %v501
        %v503 = vpop.f32.mrb[0].mxu0
        %v504 = vadd.f32 %v322, %v503
        %505 = vmatprep.mubr.bf16.mxu0 0
        %506 = vmatmul.mubr.bf16.gmra.mrb[0].mxu0 %v359
        %v507 = vpop.f32.mrb[0].mxu0
        %v508 = vadd.f32 %v318, %v507
        %v509 = vpop.f32.mrb[0].mxu0
        %v510 = vadd.f32 %v322, %v509
        %v511 = vpop.f32.mrb[0].mxu0
        %v512 = vadd.f32 %v318, %v511
        %v513 = vpop.f32.mrb[0].mxu0
        %v514 = vadd.f32 %v322, %v513
        %515 = vmatprep.mubr.bf16.mxu0 0
        %516 = vmatmul.mubr.bf16.gmra.mrb[0].mxu0 %v360
        %v517 = vpop.f32.mrb[0].mxu0
        %v518 = vadd.f32 %v318, %v517
        %v519 = vpop.f32.mrb[0].mxu0
        %v520 = vadd.f32 %v322, %v519
        %v521 = vpop.f32.mrb[0].mxu0
        %v522 = vadd.f32 %v318, %v521
        %v523 = vpop.f32.mrb[0].mxu0
        %v524 = vadd.f32 %v322, %v523
        %525 = vmatprep.mubr.bf16.mxu0 0
        %526 = vmatmul.mubr.bf16.gmra.mrb[0].mxu0 %v361
        %v527 = vpop.f32.mrb[0].mxu0
        %v528 = vadd.f32 %v318, %v527
        %v529 = vpop.f32.mrb[0].mxu0
        %v530 = vadd.f32 %v322, %v529
        %v531 = vpop.f32.mrb[0].mxu0
        %v532 = vadd.f32 %v318, %v531
        %v533 = vpop.f32.mrb[0].mxu0
        %v534 = vadd.f32 %v322, %v533
        %535 = vmatprep.mubr.bf16.mxu0 0
        %536 = vmatmul.mubr.bf16.gmra.mrb[0].mxu0 %v362
        %v537 = vpop.f32.mrb[0].mxu0
        %v538 = vadd.f32 %v318, %v537
        %v539 = vpop.f32.mrb[0].mxu0
        %v540 = vadd.f32 %v322, %v539
        %v541 = vpop.f32.mrb[0].mxu0
        %v542 = vadd.f32 %v318, %v541
        %v543 = vpop.f32.mrb[0].mxu0
        %v544 = vadd.f32 %v322, %v543
        %545 = vmatprep.mubr.bf16.mxu0 0
        %546 = vmatmul.mubr.bf16.gmra.mrb[0].mxu0 %v363
        %v547 = vpop.f32.mrb[0].mxu0
        %v548 = vadd.f32 %v318, %v547
        %v549 = vpop.f32.mrb[0].mxu0
        %v550 = vadd.f32 %v322, %v549
        %v551 = vpop.f32.mrb[0].mxu0
        %v552 = vadd.f32 %v318, %v551
        %v553 = vpop.f32.mrb[0].mxu0
        %v554 = vadd.f32 %v322, %v553
        %555 = vmatprep.mubr.bf16.mxu0 0
        %556 = vmatmul.mubr.bf16.gmra.mrb[0].mxu0 %v364
        %v557 = vpop.f32.mrb[0].mxu0
        %v558 = vadd.f32 %v318, %v557
        %v559 = vpop.f32.mrb[0].mxu0
        %v560 = vadd.f32 %v322, %v559
        %v561 = vpop.f32.mrb[0].mxu0
        %v562 = vadd.f32 %v318, %v561
        %v563 = vpop.f32.mrb[0].mxu0
        %v564 = vadd.f32 %v322, %v563
        %565 = vdwg.mxu0
        %vm566 = vcmp.ge.f32.partialorder %v488, 0.0
        %vm567 = vcmp.ge.f32.partialorder %v490, 0.0
        %vm568 = vcmp.ge.f32.partialorder %v492, 0.0
        %vm569 = vcmp.ge.f32.partialorder %v494, 0.0
        %vm570 = vcmp.ge.f32.partialorder %v498, 0.0
        %vm571 = vcmp.ge.f32.partialorder %v500, 0.0
        %vm572 = vcmp.ge.f32.partialorder %v502, 0.0
        %vm573 = vcmp.ge.f32.partialorder %v504, 0.0
        %vm574 = vcmp.ge.f32.partialorder %v508, 0.0
        %vm575 = vcmp.ge.f32.partialorder %v510, 0.0
        %vm576 = vcmp.ge.f32.partialorder %v512, 0.0
        %vm577 = vcmp.ge.f32.partialorder %v514, 0.0
        %vm578 = vcmp.ge.f32.partialorder %v518, 0.0
        %vm579 = vcmp.ge.f32.partialorder %v520, 0.0
        %vm580 = vcmp.ge.f32.partialorder %v522, 0.0
        %vm581 = vcmp.ge.f32.partialorder %v524, 0.0
        %vm582 = vcmp.ge.f32.partialorder %v528, 0.0
        %vm583 = vcmp.ge.f32.partialorder %v530, 0.0
        %vm584 = vcmp.ge.f32.partialorder %v532, 0.0
        %vm585 = vcmp.ge.f32.partialorder %v534, 0.0
        %vm586 = vcmp.ge.f32.partialorder %v538, 0.0
        %vm587 = vcmp.ge.f32.partialorder %v540, 0.0
        %vm588 = vcmp.ge.f32.partialorder %v542, 0.0
        %vm589 = vcmp.ge.f32.partialorder %v544, 0.0
        %vm590 = vcmp.ge.f32.partialorder %v548, 0.0
        %vm591 = vcmp.ge.f32.partialorder %v550, 0.0
        %vm592 = vcmp.ge.f32.partialorder %v552, 0.0
        %vm593 = vcmp.ge.f32.partialorder %v554, 0.0
        %vm594 = vcmp.ge.f32.partialorder %v558, 0.0
        %vm595 = vcmp.ge.f32.partialorder %v560, 0.0
        %vm596 = vcmp.ge.f32.partialorder %v562, 0.0
        %vm597 = vcmp.ge.f32.partialorder %v564, 0.0
        %v598 = vmul.f32 %v488, 0.01
        %v599 = vmul.f32 %v490, 0.01
        %v600 = vmul.f32 %v492, 0.01
        %v601 = vmul.f32 %v494, 0.01
        %v602 = vmul.f32 %v498, 0.01
        %v603 = vmul.f32 %v500, 0.01
        %v604 = vmul.f32 %v502, 0.01
        %v605 = vmul.f32 %v504, 0.01
        %v606 = vmul.f32 %v508, 0.01
        %v607 = vmul.f32 %v510, 0.01
        %v608 = vmul.f32 %v512, 0.01
        %v609 = vmul.f32 %v514, 0.01
        %v610 = vmul.f32 %v518, 0.01
        %v611 = vmul.f32 %v520, 0.01
        %v612 = vmul.f32 %v522, 0.01
        %v613 = vmul.f32 %v524, 0.01
        %v614 = vmul.f32 %v528, 0.01
        %v615 = vmul.f32 %v530, 0.01
        %v616 = vmul.f32 %v532, 0.01
        %v617 = vmul.f32 %v534, 0.01
        %v618 = vmul.f32 %v538, 0.01
        %v619 = vmul.f32 %v540, 0.01
        %v620 = vmul.f32 %v542, 0.01
        %v621 = vmul.f32 %v544, 0.01
        %v622 = vmul.f32 %v548, 0.01
        %v623 = vmul.f32 %v550, 0.01
        %v624 = vmul.f32 %v552, 0.01
        %v625 = vmul.f32 %v554, 0.01
        %v626 = vmul.f32 %v558, 0.01
        %v627 = vmul.f32 %v560, 0.01
        %v628 = vmul.f32 %v562, 0.01
        %v629 = vmul.f32 %v564, 0.01
        %v630 = vsel %vm566, %v488, %v598
        %v631 = vsel %vm567, %v490, %v599
        %v632 = vsel %vm568, %v492, %v600
        %v633 = vsel %vm569, %v494, %v601
        %v634 = vsel %vm570, %v498, %v602
        %v635 = vsel %vm571, %v500, %v603
        %v636 = vsel %vm572, %v502, %v604
        %v637 = vsel %vm573, %v504, %v605
        %v638 = vsel %vm574, %v508, %v606
        %v639 = vsel %vm575, %v510, %v607
        %v640 = vsel %vm576, %v512, %v608
        %v641 = vsel %vm577, %v514, %v609
        %v642 = vsel %vm578, %v518, %v610
        %v643 = vsel %vm579, %v520, %v611
        %v644 = vsel %vm580, %v522, %v612
        %v645 = vsel %vm581, %v524, %v613
        %v646 = vsel %vm582, %v528, %v614
        %v647 = vsel %vm583, %v530, %v615
        %v648 = vsel %vm584, %v532, %v616
        %v649 = vsel %vm585, %v534, %v617
        %v650 = vsel %vm586, %v538, %v618
        %v651 = vsel %vm587, %v540, %v619
        %v652 = vsel %vm588, %v542, %v620
        %v653 = vsel %vm589, %v544, %v621
        %v654 = vsel %vm590, %v548, %v622
        %v655 = vsel %vm591, %v550, %v623
        %v656 = vsel %vm592, %v552, %v624
        %v657 = vsel %vm593, %v554, %v625
        %v658 = vsel %vm594, %v558, %v626
        %v659 = vsel %vm595, %v560, %v627
        %v660 = vsel %vm596, %v562, %v628
        %v661 = vsel %vm597, %v564, %v629
        %v662 = vpack.c.bf16 %v632, %v630
        %v663 = vpack.c.bf16 %v633, %v631
        %v664 = vpack.c.bf16 %v636, %v634
        %v665 = vpack.c.bf16 %v637, %v635
        %v666 = vpack.c.bf16 %v640, %v638
        %v667 = vpack.c.bf16 %v641, %v639
        %v668 = vpack.c.bf16 %v644, %v642
        %v669 = vpack.c.bf16 %v645, %v643
        %v670 = vpack.c.bf16 %v648, %v646
        %v671 = vpack.c.bf16 %v649, %v647
        %v672 = vpack.c.bf16 %v652, %v650
        %v673 = vpack.c.bf16 %v653, %v651
        %v674 = vpack.c.bf16 %v656, %v654
        %v675 = vpack.c.bf16 %v657, %v655
        %v676 = vpack.c.bf16 %v660, %v658
        %v677 = vpack.c.bf16 %v661, %v659
        %v678 = vld [vmem:[%s3] sm:$0xf]
        %v679 = vld [vmem:[%s3 + $0x4] sm:$0xf]
        %v680 = vld [vmem:[%s3 + $0x8] sm:$0xf]
        %v681 = vld [vmem:[%s3 + $0xc] sm:$0xf]
        %v682 = vld [vmem:[%s3 + $0x10] sm:$0xf]
        %v683 = vld [vmem:[%s3 + $0x14] sm:$0xf]
        %v684 = vld [vmem:[%s3 + $0x18] sm:$0xf]
        %v685 = vld [vmem:[%s3 + $0x1c] sm:$0xf]
        %v686 = vld [vmem:[%s3 + $0x20] sm:$0xf]
        %v687 = vld [vmem:[%s3 + $0x24] sm:$0xf]
        %v688 = vld [vmem:[%s3 + $0x28] sm:$0xf]
        %v689 = vld [vmem:[%s3 + $0x2c] sm:$0xf]
        %v690 = vld [vmem:[%s3 + $0x30] sm:$0xf]
        %v691 = vld [vmem:[%s3 + $0x34] sm:$0xf]
        %v692 = vld [vmem:[%s3 + $0x38] sm:$0xf]
        %v693 = vld [vmem:[%s3 + $0x3c] sm:$0xf]
        %v694 = vld [vmem:[%s3 + $0x40] sm:$0xf]
        %v695 = vld [vmem:[%s3 + $0x44] sm:$0xf]
        %v696 = vld [vmem:[%s3 + $0x48] sm:$0xf]
        %v697 = vld [vmem:[%s3 + $0x4c] sm:$0xf]
        %v698 = vld [vmem:[%s3 + $0x50] sm:$0xf]
        %v699 = vld [vmem:[%s3 + $0x54] sm:$0xf]
        %v700 = vld [vmem:[%s3 + $0x58] sm:$0xf]
        %v701 = vld [vmem:[%s3 + $0x5c] sm:$0xf]
        %v702 = vld [vmem:[%s3 + $0x60] sm:$0xf]
        %v703 = vld [vmem:[%s3 + $0x64] sm:$0xf]
        %v704 = vld [vmem:[%s3 + $0x68] sm:$0xf]
        %v705 = vld [vmem:[%s3 + $0x6c] sm:$0xf]
        %v706 = vld [vmem:[%s3 + $0x70] sm:$0xf]
        %v707 = vld [vmem:[%s3 + $0x74] sm:$0xf]
        %v708 = vld [vmem:[%s3 + $0x78] sm:$0xf]
        %v709 = vld [vmem:[%s3 + $0x7c] sm:$0xf]
        %v710 = vld [vmem:[%s4] sm:$0x1]
        %v712 = vlaneseq
        %v713 = vshrl.u32 %v712, 7
        %v714 = vsub.s32 0, %v713
        %v715 = vrot.slane %v710, %v714
        %v749 = vunpack.c.l.b16 %v678
        %v750 = vunpack.c.l.b16 %v679
        %v751 = vunpack.c.l.b16 %v680
        %v752 = vunpack.c.l.b16 %v681
        %v753 = vunpack.c.l.b16 %v682
        %v754 = vunpack.c.l.b16 %v683
        %v755 = vunpack.c.l.b16 %v684
        %v756 = vunpack.c.l.b16 %v685
        %v757 = vunpack.c.l.b16 %v686
        %v758 = vunpack.c.l.b16 %v687
        %v759 = vunpack.c.l.b16 %v688
        %v760 = vunpack.c.l.b16 %v689
        %v761 = vunpack.c.l.b16 %v690
        %v762 = vunpack.c.l.b16 %v691
        %v763 = vunpack.c.l.b16 %v692
        %v764 = vunpack.c.l.b16 %v693
        %v765 = vunpack.c.l.b16 %v694
        %v766 = vunpack.c.l.b16 %v695
        %v767 = vunpack.c.l.b16 %v696
        %v768 = vunpack.c.l.b16 %v697
        %v769 = vunpack.c.l.b16 %v698
        %v770 = vunpack.c.l.b16 %v699
        %v771 = vunpack.c.l.b16 %v700
        %v772 = vunpack.c.l.b16 %v701
        %v773 = vunpack.c.l.b16 %v702
        %v774 = vunpack.c.l.b16 %v703
        %v775 = vunpack.c.l.b16 %v704
        %v776 = vunpack.c.l.b16 %v705
        %v777 = vunpack.c.l.b16 %v706
        %v778 = vunpack.c.l.b16 %v707
        %v779 = vunpack.c.l.b16 %v708
        %v780 = vunpack.c.l.b16 %v709
        %v781 = vpack.c.b16 %v750, %v749
        %v782 = vpack.c.b16 %v752, %v751
        %v783 = vpack.c.b16 %v754, %v753
        %v784 = vpack.c.b16 %v756, %v755
        %v785 = vpack.c.b16 %v758, %v757
        %v786 = vpack.c.b16 %v760, %v759
        %v787 = vpack.c.b16 %v762, %v761
        %v788 = vpack.c.b16 %v764, %v763
        %v789 = vpack.c.b16 %v766, %v765
        %v790 = vpack.c.b16 %v768, %v767
        %v791 = vpack.c.b16 %v770, %v769
        %v792 = vpack.c.b16 %v772, %v771
        %v793 = vpack.c.b16 %v774, %v773
        %v794 = vpack.c.b16 %v776, %v775
        %v795 = vpack.c.b16 %v778, %v777
        %v796 = vpack.c.b16 %v780, %v779
        %813 = vmatprep.subr.bf16.mxu0 0
        %814 = vmatpush1.bf16.msra.mxu0 %v781
        %815 = vmatprep.subr.bf16.mxu0 0
        %816 = vmatpush1.bf16.msra.mxu0 %v782
        %817 = vmatprep.subr.bf16.mxu0 0
        %818 = vmatpush1.bf16.msra.mxu0 %v783
        %819 = vmatprep.subr.bf16.mxu0 0
        %820 = vmatpush1.bf16.msra.mxu0 %v784
        %821 = vmatprep.subr.bf16.mxu0 0
        %822 = vmatpush1.bf16.msra.mxu0 %v785
        %823 = vmatprep.subr.bf16.mxu0 0
        %824 = vmatpush1.bf16.msra.mxu0 %v786
        %825 = vmatprep.subr.bf16.mxu0 0
        %826 = vmatpush1.bf16.msra.mxu0 %v787
        %827 = vmatprep.subr.bf16.mxu0 0
        %828 = vmatpush1.bf16.msra.mxu0 %v788
        %829 = vmatprep.subr.bf16.mxu0 0
        %830 = vmatpush1.bf16.msra.mxu0 %v789
        %831 = vmatprep.subr.bf16.mxu0 0
        %832 = vmatpush1.bf16.msra.mxu0 %v790
        %833 = vmatprep.subr.bf16.mxu0 0
        %834 = vmatpush1.bf16.msra.mxu0 %v791
        %835 = vmatprep.subr.bf16.mxu0 0
        %836 = vmatpush1.bf16.msra.mxu0 %v792
        %837 = vmatprep.subr.bf16.mxu0 0
        %838 = vmatpush1.bf16.msra.mxu0 %v793
        %839 = vmatprep.subr.bf16.mxu0 0
        %840 = vmatpush1.bf16.msra.mxu0 %v794
        %841 = vmatprep.subr.bf16.mxu0 0
        %842 = vmatpush1.bf16.msra.mxu0 %v795
        %843 = vmatprep.subr.bf16.mxu0 0
        %844 = vmatpush1.bf16.msra.mxu0 %v796
        %845 = vmatprep.mubr.bf16.mxu0 %v663
        %846 = vmatmul.mubr.bf16.gmra.mrb[0].mxu0 %v662
        %v847 = vpop.f32.mrb[0].mxu0
        %v848 = vadd.f32 %v715, %v847
        %v849 = vpop.f32.mrb[0].mxu0
        %v850 = vpop.f32.mrb[0].mxu0
        %v851 = vadd.f32 %v715, %v850
        %v852 = vpop.f32.mrb[0].mxu0
        %853 = vmatprep.mubr.bf16.mxu0 %v665
        %854 = vmatmul.mubr.bf16.gmra.mrb[0].mxu0 %v664
        %v855 = vpop.f32.mrb[0].mxu0
        %v856 = vadd.f32 %v715, %v855
        %v857 = vpop.f32.mrb[0].mxu0
        %v858 = vpop.f32.mrb[0].mxu0
        %v859 = vadd.f32 %v715, %v858
        %v860 = vpop.f32.mrb[0].mxu0
        %861 = vmatprep.mubr.bf16.mxu0 %v667
        %862 = vmatmul.mubr.bf16.gmra.mrb[0].mxu0 %v666
        %v863 = vpop.f32.mrb[0].mxu0
        %v864 = vadd.f32 %v715, %v863
        %v865 = vpop.f32.mrb[0].mxu0
        %v866 = vpop.f32.mrb[0].mxu0
        %v867 = vadd.f32 %v715, %v866
        %v868 = vpop.f32.mrb[0].mxu0
        %869 = vmatprep.mubr.bf16.mxu0 %v669
        %870 = vmatmul.mubr.bf16.gmra.mrb[0].mxu0 %v668
        %v871 = vpop.f32.mrb[0].mxu0
        %v872 = vadd.f32 %v715, %v871
        %v873 = vpop.f32.mrb[0].mxu0
        %v874 = vpop.f32.mrb[0].mxu0
        %v875 = vadd.f32 %v715, %v874
        %v876 = vpop.f32.mrb[0].mxu0
        %877 = vmatprep.mubr.bf16.mxu0 %v671
        %878 = vmatmul.mubr.bf16.gmra.mrb[0].mxu0 %v670
        %v879 = vpop.f32.mrb[0].mxu0
        %v880 = vadd.f32 %v715, %v879
        %v881 = vpop.f32.mrb[0].mxu0
        %v882 = vpop.f32.mrb[0].mxu0
        %v883 = vadd.f32 %v715, %v882
        %v884 = vpop.f32.mrb[0].mxu0
        %885 = vmatprep.mubr.bf16.mxu0 %v673
        %886 = vmatmul.mubr.bf16.gmra.mrb[0].mxu0 %v672
        %v887 = vpop.f32.mrb[0].mxu0
        %v888 = vadd.f32 %v715, %v887
        %v889 = vpop.f32.mrb[0].mxu0
        %v890 = vpop.f32.mrb[0].mxu0
        %v891 = vadd.f32 %v715, %v890
        %v892 = vpop.f32.mrb[0].mxu0
        %893 = vmatprep.mubr.bf16.mxu0 %v675
        %894 = vmatmul.mubr.bf16.gmra.mrb[0].mxu0 %v674
        %v895 = vpop.f32.mrb[0].mxu0
        %v896 = vadd.f32 %v715, %v895
        %v897 = vpop.f32.mrb[0].mxu0
        %v898 = vpop.f32.mrb[0].mxu0
        %v899 = vadd.f32 %v715, %v898
        %v900 = vpop.f32.mrb[0].mxu0
        %901 = vmatprep.mubr.bf16.mxu0 %v677
        %902 = vmatmul.mubr.bf16.gmra.mrb[0].mxu0 %v676
        %v903 = vpop.f32.mrb[0].mxu0
        %v904 = vadd.f32 %v715, %v903
        %v905 = vpop.f32.mrb[0].mxu0
        %v906 = vpop.f32.mrb[0].mxu0
        %v907 = vadd.f32 %v715, %v906
        %v908 = vpop.f32.mrb[0].mxu0
        %909 = vdwg.mxu0
        %vm910 = vcmp.ge.f32.partialorder %v848, 0.0
        %vm911 = vcmp.ge.f32.partialorder %v851, 0.0
        %vm912 = vcmp.ge.f32.partialorder %v856, 0.0
        %vm913 = vcmp.ge.f32.partialorder %v859, 0.0
        %vm914 = vcmp.ge.f32.partialorder %v864, 0.0
        %vm915 = vcmp.ge.f32.partialorder %v867, 0.0
        %vm916 = vcmp.ge.f32.partialorder %v872, 0.0
        %vm917 = vcmp.ge.f32.partialorder %v875, 0.0
        %vm918 = vcmp.ge.f32.partialorder %v880, 0.0
        %vm919 = vcmp.ge.f32.partialorder %v883, 0.0
        %vm920 = vcmp.ge.f32.partialorder %v888, 0.0
        %vm921 = vcmp.ge.f32.partialorder %v891, 0.0
        %vm922 = vcmp.ge.f32.partialorder %v896, 0.0
        %vm923 = vcmp.ge.f32.partialorder %v899, 0.0
        %vm924 = vcmp.ge.f32.partialorder %v904, 0.0
        %vm925 = vcmp.ge.f32.partialorder %v907, 0.0
        %v926 = vmul.f32 %v848, 0.01
        %v927 = vmul.f32 %v851, 0.01
        %v928 = vmul.f32 %v856, 0.01
        %v929 = vmul.f32 %v859, 0.01
        %v930 = vmul.f32 %v864, 0.01
        %v931 = vmul.f32 %v867, 0.01
        %v932 = vmul.f32 %v872, 0.01
        %v933 = vmul.f32 %v875, 0.01
        %v934 = vmul.f32 %v880, 0.01
        %v935 = vmul.f32 %v883, 0.01
        %v936 = vmul.f32 %v888, 0.01
        %v937 = vmul.f32 %v891, 0.01
        %v938 = vmul.f32 %v896, 0.01
        %v939 = vmul.f32 %v899, 0.01
        %v940 = vmul.f32 %v904, 0.01
        %v941 = vmul.f32 %v907, 0.01
        %v942 = vsel %vm910, %v848, %v926
        %v943 = vsel %vm911, %v851, %v927
        %v944 = vsel %vm912, %v856, %v928
        %v945 = vsel %vm913, %v859, %v929
        %v946 = vsel %vm914, %v864, %v930
        %v947 = vsel %vm915, %v867, %v931
        %v948 = vsel %vm916, %v872, %v932
        %v949 = vsel %vm917, %v875, %v933
        %v950 = vsel %vm918, %v880, %v934
        %v951 = vsel %vm919, %v883, %v935
        %v952 = vsel %vm920, %v888, %v936
        %v953 = vsel %vm921, %v891, %v937
        %v954 = vsel %vm922, %v896, %v938
        %v955 = vsel %vm923, %v899, %v939
        %v956 = vsel %vm924, %v904, %v940
        %v957 = vsel %vm925, %v907, %v941
        %v958 = vpack.c.bf16 %v943, %v942
        %v959 = vpack.c.bf16 %v945, %v944
        %v960 = vpack.c.bf16 %v947, %v946
        %v961 = vpack.c.bf16 %v949, %v948
        %v962 = vpack.c.bf16 %v951, %v950
        %v963 = vpack.c.bf16 %v953, %v952
        %v964 = vpack.c.bf16 %v955, %v954
        %v965 = vpack.c.bf16 %v957, %v956
        %v966 = vld [vmem:[%s5] sm:$0xff]
        %v967 = vld [vmem:[%s5 + $0x8] sm:$0xff]
        %v968 = vld [vmem:[%s5 + $0x10] sm:$0xff]
        %v969 = vld [vmem:[%s5 + $0x18] sm:$0xff]
        %v970 = vld [vmem:[%s5 + $0x20] sm:$0xff]
        %v971 = vld [vmem:[%s5 + $0x28] sm:$0xff]
        %v972 = vld [vmem:[%s5 + $0x30] sm:$0xff]
        %v973 = vld [vmem:[%s5 + $0x38] sm:$0xff]
        %v974 = vld [vmem:[%s5 + $0x40] sm:$0xff]
        %v975 = vld [vmem:[%s5 + $0x48] sm:$0xff]
        %v976 = vld [vmem:[%s5 + $0x50] sm:$0xff]
        %v977 = vld [vmem:[%s5 + $0x58] sm:$0xff]
        %v978 = vld [vmem:[%s5 + $0x60] sm:$0xff]
        %v979 = vld [vmem:[%s5 + $0x68] sm:$0xff]
        %v980 = vld [vmem:[%s5 + $0x70] sm:$0xff]
        %v981 = vld [vmem:[%s5 + $0x78] sm:$0xff]
        %v982 = vld [vmem:[%s6] sm:$0x3]
        %v984 = vlaneseq
        %v985 = vshrl.u32 %v984, 7
        %v986 = vsub.s32 0, %v985
        %v987 = vrot.slane %v982, %v986
        %v988 = vlaneseq
        %v989 = vshrl.u32 %v988, 7
        %v990 = vsub.s32 1, %v989
        %v991 = vrot.slane %v982, %v990
        %v1010 = vunpack.c.l.b16 %v966
        %v1011 = vunpack.c.h.b16 %v966
        %v1012 = vunpack.c.l.b16 %v967
        %v1013 = vunpack.c.h.b16 %v967
        %v1014 = vunpack.c.l.b16 %v968
        %v1015 = vunpack.c.h.b16 %v968
        %v1016 = vunpack.c.l.b16 %v969
        %v1017 = vunpack.c.h.b16 %v969
        %v1018 = vunpack.c.l.b16 %v970
        %v1019 = vunpack.c.h.b16 %v970
        %v1020 = vunpack.c.l.b16 %v971
        %v1021 = vunpack.c.h.b16 %v971
        %v1022 = vunpack.c.l.b16 %v972
        %v1023 = vunpack.c.h.b16 %v972
        %v1024 = vunpack.c.l.b16 %v973
        %v1025 = vunpack.c.h.b16 %v973
        %v1026 = vunpack.c.l.b16 %v974
        %v1027 = vunpack.c.h.b16 %v974
        %v1028 = vunpack.c.l.b16 %v975
        %v1029 = vunpack.c.h.b16 %v975
        %v1030 = vunpack.c.l.b16 %v976
        %v1031 = vunpack.c.h.b16 %v976
        %v1032 = vunpack.c.l.b16 %v977
        %v1033 = vunpack.c.h.b16 %v977
        %v1034 = vunpack.c.l.b16 %v978
        %v1035 = vunpack.c.h.b16 %v978
        %v1036 = vunpack.c.l.b16 %v979
        %v1037 = vunpack.c.h.b16 %v979
        %v1038 = vunpack.c.l.b16 %v980
        %v1039 = vunpack.c.h.b16 %v980
        %v1040 = vunpack.c.l.b16 %v981
        %v1041 = vunpack.c.h.b16 %v981
        %v1042 = vpack.c.b16 %v1012, %v1010
        %v1043 = vpack.c.b16 %v1013, %v1011
        %v1044 = vpack.c.b16 %v1016, %v1014
        %v1045 = vpack.c.b16 %v1017, %v1015
        %v1046 = vpack.c.b16 %v1020, %v1018
        %v1047 = vpack.c.b16 %v1021, %v1019
        %v1048 = vpack.c.b16 %v1024, %v1022
        %v1049 = vpack.c.b16 %v1025, %v1023
        %v1050 = vpack.c.b16 %v1028, %v1026
        %v1051 = vpack.c.b16 %v1029, %v1027
        %v1052 = vpack.c.b16 %v1032, %v1030
        %v1053 = vpack.c.b16 %v1033, %v1031
        %v1054 = vpack.c.b16 %v1036, %v1034
        %v1055 = vpack.c.b16 %v1037, %v1035
        %v1056 = vpack.c.b16 %v1040, %v1038
        %v1057 = vpack.c.b16 %v1041, %v1039
        %1074 = vmatprep.subr.bf16.mxu0 %v1043
        %1075 = vmatpush1.bf16.msra.mxu0 %v1042
        %1076 = vmatprep.subr.bf16.mxu0 %v1045
        %1077 = vmatpush1.bf16.msra.mxu0 %v1044
        %1078 = vmatprep.subr.bf16.mxu0 %v1047
        %1079 = vmatpush1.bf16.msra.mxu0 %v1046
        %1080 = vmatprep.subr.bf16.mxu0 %v1049
        %1081 = vmatpush1.bf16.msra.mxu0 %v1048
        %1082 = vmatprep.subr.bf16.mxu0 %v1051
        %1083 = vmatpush1.bf16.msra.mxu0 %v1050
        %1084 = vmatprep.subr.bf16.mxu0 %v1053
        %1085 = vmatpush1.bf16.msra.mxu0 %v1052
        %1086 = vmatprep.subr.bf16.mxu0 %v1055
        %1087 = vmatpush1.bf16.msra.mxu0 %v1054
        %1088 = vmatprep.subr.bf16.mxu0 %v1057
        %1089 = vmatpush1.bf16.msra.mxu0 %v1056
        %1090 = vmatprep.subr.bf16.mxu0 0
        %1091 = vmatpush1.bf16.msra.mxu0 0
        %1092 = vmatprep.subr.bf16.mxu0 0
        %1093 = vmatpush1.bf16.msra.mxu0 0
        %1094 = vmatprep.subr.bf16.mxu0 0
        %1095 = vmatpush1.bf16.msra.mxu0 0
        %1096 = vmatprep.subr.bf16.mxu0 0
        %1097 = vmatpush1.bf16.msra.mxu0 0
        %1098 = vmatprep.subr.bf16.mxu0 0
        %1099 = vmatpush1.bf16.msra.mxu0 0
        %1100 = vmatprep.subr.bf16.mxu0 0
        %1101 = vmatpush1.bf16.msra.mxu0 0
        %1102 = vmatprep.subr.bf16.mxu0 0
        %1103 = vmatpush1.bf16.msra.mxu0 0
        %1104 = vmatprep.subr.bf16.mxu0 0
        %1105 = vmatpush1.bf16.msra.mxu0 0
        %1106 = vmatprep.mubr.bf16.mxu0 0
        %1107 = vmatmul.mubr.bf16.gmra.mrb[0].mxu0 %v958
        %v1108 = vpop.f32.mrb[0].mxu0
        %v1109 = vadd.f32 %v987, %v1108
        %v1110 = vpop.f32.mrb[0].mxu0
        %v1111 = vadd.f32 %v991, %v1110
        %v1112 = vpop.f32.mrb[0].mxu0
        %v1113 = vadd.f32 %v987, %v1112
        %v1114 = vpop.f32.mrb[0].mxu0
        %v1115 = vadd.f32 %v991, %v1114
        %1116 = vmatprep.mubr.bf16.mxu0 0
        %1117 = vmatmul.mubr.bf16.gmra.mrb[0].mxu0 %v959
        %v1118 = vpop.f32.mrb[0].mxu0
        %v1119 = vadd.f32 %v987, %v1118
        %v1120 = vpop.f32.mrb[0].mxu0
        %v1121 = vadd.f32 %v991, %v1120
        %v1122 = vpop.f32.mrb[0].mxu0
        %v1123 = vadd.f32 %v987, %v1122
        %v1124 = vpop.f32.mrb[0].mxu0
        %v1125 = vadd.f32 %v991, %v1124
        %1126 = vmatprep.mubr.bf16.mxu0 0
        %1127 = vmatmul.mubr.bf16.gmra.mrb[0].mxu0 %v960
        %v1128 = vpop.f32.mrb[0].mxu0
        %v1129 = vadd.f32 %v987, %v1128
        %v1130 = vpop.f32.mrb[0].mxu0
        %v1131 = vadd.f32 %v991, %v1130
        %v1132 = vpop.f32.mrb[0].mxu0
        %v1133 = vadd.f32 %v987, %v1132
        %v1134 = vpop.f32.mrb[0].mxu0
        %v1135 = vadd.f32 %v991, %v1134
        %1136 = vmatprep.mubr.bf16.mxu0 0
        %1137 = vmatmul.mubr.bf16.gmra.mrb[0].mxu0 %v961
        %v1138 = vpop.f32.mrb[0].mxu0
        %v1139 = vadd.f32 %v987, %v1138
        %v1140 = vpop.f32.mrb[0].mxu0
        %v1141 = vadd.f32 %v991, %v1140
        %v1142 = vpop.f32.mrb[0].mxu0
        %v1143 = vadd.f32 %v987, %v1142
        %v1144 = vpop.f32.mrb[0].mxu0
        %v1145 = vadd.f32 %v991, %v1144
        %1146 = vmatprep.mubr.bf16.mxu0 0
        %1147 = vmatmul.mubr.bf16.gmra.mrb[0].mxu0 %v962
        %v1148 = vpop.f32.mrb[0].mxu0
        %v1149 = vadd.f32 %v987, %v1148
        %v1150 = vpop.f32.mrb[0].mxu0
        %v1151 = vadd.f32 %v991, %v1150
        %v1152 = vpop.f32.mrb[0].mxu0
        %v1153 = vadd.f32 %v987, %v1152
        %v1154 = vpop.f32.mrb[0].mxu0
        %v1155 = vadd.f32 %v991, %v1154
        %1156 = vmatprep.mubr.bf16.mxu0 0
        %1157 = vmatmul.mubr.bf16.gmra.mrb[0].mxu0 %v963
        %v1158 = vpop.f32.mrb[0].mxu0
        %v1159 = vadd.f32 %v987, %v1158
        %v1160 = vpop.f32.mrb[0].mxu0
        %v1161 = vadd.f32 %v991, %v1160
        %v1162 = vpop.f32.mrb[0].mxu0
        %v1163 = vadd.f32 %v987, %v1162
        %v1164 = vpop.f32.mrb[0].mxu0
        %v1165 = vadd.f32 %v991, %v1164
        %1166 = vmatprep.mubr.bf16.mxu0 0
        %1167 = vmatmul.mubr.bf16.gmra.mrb[0].mxu0 %v964
        %v1168 = vpop.f32.mrb[0].mxu0
        %v1169 = vadd.f32 %v987, %v1168
        %v1170 = vpop.f32.mrb[0].mxu0
        %v1171 = vadd.f32 %v991, %v1170
        %v1172 = vpop.f32.mrb[0].mxu0
        %v1173 = vadd.f32 %v987, %v1172
        %v1174 = vpop.f32.mrb[0].mxu0
        %v1175 = vadd.f32 %v991, %v1174
        %1176 = vmatprep.mubr.bf16.mxu0 0
        %1177 = vmatmul.mubr.bf16.gmra.mrb[0].mxu0 %v965
        %v1178 = vpop.f32.mrb[0].mxu0
        %v1179 = vadd.f32 %v987, %v1178
        %v1180 = vpop.f32.mrb[0].mxu0
        %v1181 = vadd.f32 %v991, %v1180
        %v1182 = vpop.f32.mrb[0].mxu0
        %v1183 = vadd.f32 %v987, %v1182
        %v1184 = vpop.f32.mrb[0].mxu0
        %v1185 = vadd.f32 %v991, %v1184
        %1186 = vdwg.mxu0
        %1187 = vst [vmem:[%s272] sm:$0xff] %v1109
        %1188 = vst [vmem:[%s272 + $0x8] sm:$0xff] %v1111
        %1189 = vst [vmem:[%s272 + $0x10] sm:$0xff] %v1113
        %1190 = vst [vmem:[%s272 + $0x18] sm:$0xff] %v1115
        %1191 = vst [vmem:[%s272 + $0x20] sm:$0xff] %v1119
        %1192 = vst [vmem:[%s272 + $0x28] sm:$0xff] %v1121
        %1193 = vst [vmem:[%s272 + $0x30] sm:$0xff] %v1123
        %1194 = vst [vmem:[%s272 + $0x38] sm:$0xff] %v1125
        %1195 = vst [vmem:[%s272 + $0x40] sm:$0xff] %v1129
        %1196 = vst [vmem:[%s272 + $0x48] sm:$0xff] %v1131
        %1197 = vst [vmem:[%s272 + $0x50] sm:$0xff] %v1133
        %1198 = vst [vmem:[%s272 + $0x58] sm:$0xff] %v1135
        %1199 = vst [vmem:[%s272 + $0x60] sm:$0xff] %v1139
        %1200 = vst [vmem:[%s272 + $0x68] sm:$0xff] %v1141
        %1201 = vst [vmem:[%s272 + $0x70] sm:$0xff] %v1143
        %1202 = vst [vmem:[%s272 + $0x78] sm:$0xff] %v1145
        %1203 = vst [vmem:[%s272 + $0x80] sm:$0xff] %v1149
        %1204 = vst [vmem:[%s272 + $0x88] sm:$0xff] %v1151
        %1205 = vst [vmem:[%s272 + $0x90] sm:$0xff] %v1153
        %1206 = vst [vmem:[%s272 + $0x98] sm:$0xff] %v1155
        %1207 = vst [vmem:[%s272 + $0xa0] sm:$0xff] %v1159
        %1208 = vst [vmem:[%s272 + $0xa8] sm:$0xff] %v1161
        %1209 = vst [vmem:[%s272 + $0xb0] sm:$0xff] %v1163
        %1210 = vst [vmem:[%s272 + $0xb8] sm:$0xff] %v1165
        %1211 = vst [vmem:[%s272 + $0xc0] sm:$0xff] %v1169
        %1212 = vst [vmem:[%s272 + $0xc8] sm:$0xff] %v1171
        %1213 = vst [vmem:[%s272 + $0xd0] sm:$0xff] %v1173
        %1214 = vst [vmem:[%s272 + $0xd8] sm:$0xff] %v1175
        %1215 = vst [vmem:[%s272 + $0xe0] sm:$0xff] %v1179
        %1216 = vst [vmem:[%s272 + $0xe8] sm:$0xff] %v1181
        %1217 = vst [vmem:[%s272 + $0xf0] sm:$0xff] %v1183
        %1218 = vst [vmem:[%s272 + $0xf8] sm:$0xff] %v1185
        %s1219 = sand.u32 %s181, 1
        %s1220 = scalar_lea.sflag [#allocation3], %s1219
        %s1221 = sand.u32 %s181, 1
        %s1222 = smul.addr %s1221, 256
        %s1223 = scalar_lea.vmem [#allocation2], %s1222
        // Predicated region
        $region49: #{metadata_mlp_forward.1} parent=47 // pred_check
          %p1224 = pneg %p191
        $region50: #{metadata_mlp_forward.1} parent=47 // pred_check_branch
          %1226 = sbr.rel (%p1224) target = $region52
        $region51: #{metadata_mlp_forward.1} parent=47 // pred_region
          %s1227 = smul.u32 16, %s21
          %s1229 = ssub.s32 4096, 4096
          %1230 = vsyncadd %s1220, %s1229
          %s1231 = smul.addr %s1227, 2
          %s1232 = smul.addr %s1231, 128
          %s1233 = scalar_lea.hbm %s7, %s1232
          %s1234 = sshll.u32 %s1223, 4
          %s1235 = int_to_ptr.vmem [resolvable:$true] %s1234
          %1240 = dma.vmem_to_hbm [thread:$0]  %s1235, 4096, %s1233, %s1220, 256, 256, 16
        $region52: #{metadata_mlp_forward.1} parent=47 // pred_fallthru
          _
      $region48: #{metadata_mlp_forward.1} parent=5 // pred_fallthru
        _
      %p1241 = scmp.le.s32.totalorder 2, %s16
      // Predicated region
      $region53: #{metadata_mlp_forward.1} parent=5 // pred_check
        %p1242 = pneg %p1241
      $region54: #{metadata_mlp_forward.1} parent=5 // pred_check_branch
        %1244 = sbr.rel (%p1242) target = $region56
      $region55: #{metadata_mlp_forward.1} parent=5 // pred_region
        %s1245 = ssub.s32 %s16, 2
        // Predicated region
        $region57: #{metadata_mlp_forward.1} parent=55 // pred_check
          %p1246 = pneg %p197
        $region58: #{metadata_mlp_forward.1} parent=55 // pred_check_branch
          %1248 = sbr.rel (%p1246) target = $region60
        $region59: #{metadata_mlp_forward.1} parent=55 // pred_region
          %s1249 = sand.u32 %s182, 1
          %s1250 = scalar_lea.sflag [#allocation3], %s1249
          %s1251 = sand.u32 %s182, 1
          %s1252 = smul.addr %s1251, 256
          %s1253 = scalar_lea.vmem [#allocation2], %s1252
          %1254 = dma.done %s1250, 4096
        $region60: #{metadata_mlp_forward.1} parent=55 // pred_fallthru
          _
      $region56: #{metadata_mlp_forward.1} parent=5 // pred_fallthru
        _
    $region6: #{metadata_mlp_forward.1} parent=1 // loop_footer
      %s20 = sadd.s32 1, %s16
    $region7: #{metadata_mlp_forward.1} parent=1 // loop_footer_branch
      %15 = sbr.rel target = $region3
    $region8: #{metadata_mlp_forward.1} parent=1 // loop_exit
      _
    %1255 = vsyncpa [#allocation3], 1
    %s1256 = scalar_lea.sflag [#allocation3], 1
    %1257 = vsyncpa %s1256, 1

</llo_original>
